<compile_context>
chip_gen: v5e
topology: v5e:2x2
jax: 0.10.0
libtpu: 0.0.40
codegen_flags: <defaults>
</compile_context>

<pallas_src>
import jax
import jax.numpy as jnp
from jax.experimental import pallas as pl
from jax.experimental.pallas import tpu as pltpu

NUM_PARAMS = 10
DIM = 10
LANE_BLOCK = 512     # column block for the large-N tiled path (lane-dense)
SMALL_N_MAX = 1024   # up to this many columns: single full-extent block, no pad


def _fold_w_total(p):
    """p: (10, 10, 10) f32 array (already loaded). Returns W_total = W9·...·W0
    with W_i = p[i//2] + p[i], folded with a log-depth pairwise tree
    (dependent-matmul depth 4 instead of 9)."""
    w = [p[i // 2] + p[i] for i in range(NUM_PARAMS)]  # 10 independent VPU adds

    def mm(a, b):
        return jnp.dot(a, b, preferred_element_type=jnp.float32)

    # Level 1: 5 independent 10x10 products.
    p10 = mm(w[1], w[0])
    p32 = mm(w[3], w[2])
    p54 = mm(w[5], w[4])
    p76 = mm(w[7], w[6])
    p98 = mm(w[9], w[8])
    # Level 2.
    q30 = mm(p32, p10)     # W3·W2·W1·W0
    q74 = mm(p76, p54)     # W7·W6·W5·W4
    # Level 3.
    r70 = mm(q74, q30)     # W7·...·W0
    # Level 4.
    return mm(p98, r70)    # W9·...·W0


def fold_kernel(params_ref, w_ref):
    # Runs exactly once (grid=(1,)): produce the (10,10) combined weight.
    w_ref[...] = _fold_w_total(params_ref[...]).astype(w_ref.dtype)


def apply_kernel(w_ref, x_ref, o_ref):
    # Per-block body for large N: a single MXU pass per 512-wide column block.
    o_ref[...] = jnp.dot(w_ref[...], x_ref[...],
                         preferred_element_type=jnp.float32).astype(o_ref.dtype)


def fold_and_apply_kernel(params_ref, x_ref, o_ref):
    # Small-N path: one launch does fold + apply (launch-overhead bound anyway).
    w_total = _fold_w_total(params_ref[...])
    o_ref[...] = jnp.dot(w_total, x_ref[...],
                         preferred_element_type=jnp.float32).astype(o_ref.dtype)


def my_module_forward(params, x):
    """params: (10, 10, 10) f32, x: (10, N) f32 -> (10, N) f32."""
    dim, n = x.shape
    assert dim == DIM and params.shape == (NUM_PARAMS, DIM, DIM)

    if n <= SMALL_N_MAX:
        # Small N: no jnp.pad / slice round trip, full-extent blocks, one launch.
        return pl.pallas_call(
            fold_and_apply_kernel,
            out_shape=jax.ShapeDtypeStruct((DIM, n), x.dtype),
            grid=(1,),
            in_specs=[
                pl.BlockSpec((NUM_PARAMS, DIM, DIM), lambda j: (0, 0, 0)),
                pl.BlockSpec((DIM, n), lambda j: (0, 0)),
            ],
            out_specs=pl.BlockSpec((DIM, n), lambda j: (0, 0)),
        )(params, x)

    # Large N:
    # (1) Fold W_total exactly once, off the per-block path. Computed in its
    #     own single-step kernel (not pl.when + scratch), so the tiled apply
    #     grid below stays correct under v7x 2-TensorCore "parallel" sharding.
    w_total = pl.pallas_call(
        fold_kernel,
        out_shape=jax.ShapeDtypeStruct((DIM, DIM), params.dtype),
        grid=(1,),
        in_specs=[pl.BlockSpec((NUM_PARAMS, DIM, DIM), lambda j: (0, 0, 0))],
        out_specs=pl.BlockSpec((DIM, DIM), lambda j: (0, 0)),
    )(params)

    # (2) Lane-dense tiled apply. Zero-padded columns are independent and are
    #     exactly annihilated by W_total; sliced off afterwards.
    n_pad = ((n + LANE_BLOCK - 1) // LANE_BLOCK) * LANE_BLOCK
    x_p = x if n_pad == n else jnp.pad(x, ((0, 0), (0, n_pad - n)))

    out = pl.pallas_call(
        apply_kernel,
        out_shape=jax.ShapeDtypeStruct((DIM, n_pad), x.dtype),
        grid=(n_pad // LANE_BLOCK,),
        in_specs=[
            # W_total: tiny (tile-padded ~8 KB), resident across all steps.
            pl.BlockSpec((DIM, DIM), lambda j: (0, 0)),
            # x: one lane-dense 512-column block per grid step.
            pl.BlockSpec((DIM, LANE_BLOCK), lambda j: (0, j)),
        ],
        out_specs=pl.BlockSpec((DIM, LANE_BLOCK), lambda j: (0, j)),
        compiler_params=pltpu.CompilerParams(
            dimension_semantics=("parallel",)),  # megacore/2-TC sharding on v7x
    )(w_total, x_p)

    return out if n_pad == n else out[:, :n]


def reference_forward(params, x):
    # Pure-JAX reference mirroring the PyTorch loop exactly.
    for i in range(NUM_PARAMS):
        x = params[i // 2] @ x + params[i] @ x
    return x


def _check(out, ref, tag):
    # Product of 10 random Gaussian 10x10 matrices amplifies magnitudes, and
    # the log-depth fold reassociates the f32 chain, so use a norm-relative
    # tolerance rather than tight elementwise rtol.
    rel_err = float(jnp.max(jnp.abs(out - ref)) / jnp.max(jnp.abs(ref)))
    assert rel_err < 1e-3, f"{tag}: mismatch vs reference, rel_err={rel_err}"


if __name__ == "__main__":
    key = jax.random.PRNGKey(0)
    k_params, k_x, k_x2 = jax.random.split(key, 3)

    # Deterministic "torch.randn(10, 10)" analogue for each of the 10 params.
    params = jax.random.normal(k_params, (NUM_PARAMS, DIM, DIM), dtype=jnp.float32)

    # Primary small-shape case: x is (10, 16) so params[i].mm(x) is well defined.
    x = jax.random.normal(k_x, (DIM, 16), dtype=jnp.float32)
    out = jax.block_until_ready(my_module_forward(params, x))
    assert out.shape == (DIM, 16)
    _check(out, reference_forward(params, x), "small-N path")

    # Quick sanity check of the tiled large-N path (exercises fold + apply,
    # grid > 1, padding/slice). Still tiny in absolute terms.
    x_big = jax.random.normal(k_x2, (DIM, 1536), dtype=jnp.float32)
    out_big = jax.block_until_ready(my_module_forward(params, x_big))
    assert out_big.shape == (DIM, 1536)
    _check(out_big, reference_forward(params, x_big), "large-N path")

    print("KERNEL_OK")
</pallas_src>

<mosaic_0001>
module attributes {stable_mosaic.version = 11 : i64} {
  func.func @fold_and_apply_kernel(%arg0: i32, %arg1: memref<10x10x10xf32, #tpu.memory_space<vmem>>, %arg2: memref<10x16xf32, #tpu.memory_space<vmem>>, %arg3: memref<10x16xf32, #tpu.memory_space<vmem>>) attributes {dimension_semantics = [#tpu.dimension_semantics<arbitrary>], iteration_bounds = array<i64: 1>, scalar_prefetch = 0 : i64, scratch_operands = 0 : i64, tpu.core_type = #tpu.core_type<tc>, window_params = [{pipeline_mode = #tpu.pipeline_mode<synchronous>, transform_indices = @transform_0, window_bounds = array<i64: 10, 10, 10>}, {pipeline_mode = #tpu.pipeline_mode<synchronous>, transform_indices = @transform_1, window_bounds = array<i64: 10, 16>}, {pipeline_mode = #tpu.pipeline_mode<synchronous>, transform_indices = @transform_2, window_bounds = array<i64: 10, 16>}]} {
    %c0 = arith.constant 0 : index
    %c0_0 = arith.constant 0 : index
    %c0_1 = arith.constant 0 : index
    %0 = vector.load %arg1[%c0, %c0_0, %c0_1] : memref<10x10x10xf32, #tpu.memory_space<vmem>>, vector<10x10x10xf32>
    %1 = vector.extract_strided_slice %0 {offsets = [0, 0, 0], sizes = [1, 10, 10], strides = [1, 1, 1]} : vector<10x10x10xf32> to vector<1x10x10xf32>
    %2 = vector.shape_cast %1 : vector<1x10x10xf32> to vector<10x10xf32>
    %3 = vector.extract_strided_slice %0 {offsets = [0, 0, 0], sizes = [1, 10, 10], strides = [1, 1, 1]} : vector<10x10x10xf32> to vector<1x10x10xf32>
    %4 = vector.shape_cast %3 : vector<1x10x10xf32> to vector<10x10xf32>
    %5 = arith.addf %2, %4 : vector<10x10xf32>
    %6 = vector.extract_strided_slice %0 {offsets = [0, 0, 0], sizes = [1, 10, 10], strides = [1, 1, 1]} : vector<10x10x10xf32> to vector<1x10x10xf32>
    %7 = vector.shape_cast %6 : vector<1x10x10xf32> to vector<10x10xf32>
    %8 = vector.extract_strided_slice %0 {offsets = [1, 0, 0], sizes = [1, 10, 10], strides = [1, 1, 1]} : vector<10x10x10xf32> to vector<1x10x10xf32>
    %9 = vector.shape_cast %8 : vector<1x10x10xf32> to vector<10x10xf32>
    %10 = arith.addf %7, %9 : vector<10x10xf32>
    %11 = vector.extract_strided_slice %0 {offsets = [1, 0, 0], sizes = [1, 10, 10], strides = [1, 1, 1]} : vector<10x10x10xf32> to vector<1x10x10xf32>
    %12 = vector.shape_cast %11 : vector<1x10x10xf32> to vector<10x10xf32>
    %13 = vector.extract_strided_slice %0 {offsets = [2, 0, 0], sizes = [1, 10, 10], strides = [1, 1, 1]} : vector<10x10x10xf32> to vector<1x10x10xf32>
    %14 = vector.shape_cast %13 : vector<1x10x10xf32> to vector<10x10xf32>
    %15 = arith.addf %12, %14 : vector<10x10xf32>
    %16 = vector.extract_strided_slice %0 {offsets = [1, 0, 0], sizes = [1, 10, 10], strides = [1, 1, 1]} : vector<10x10x10xf32> to vector<1x10x10xf32>
    %17 = vector.shape_cast %16 : vector<1x10x10xf32> to vector<10x10xf32>
    %18 = vector.extract_strided_slice %0 {offsets = [3, 0, 0], sizes = [1, 10, 10], strides = [1, 1, 1]} : vector<10x10x10xf32> to vector<1x10x10xf32>
    %19 = vector.shape_cast %18 : vector<1x10x10xf32> to vector<10x10xf32>
    %20 = arith.addf %17, %19 : vector<10x10xf32>
    %21 = vector.extract_strided_slice %0 {offsets = [2, 0, 0], sizes = [1, 10, 10], strides = [1, 1, 1]} : vector<10x10x10xf32> to vector<1x10x10xf32>
    %22 = vector.shape_cast %21 : vector<1x10x10xf32> to vector<10x10xf32>
    %23 = vector.extract_strided_slice %0 {offsets = [4, 0, 0], sizes = [1, 10, 10], strides = [1, 1, 1]} : vector<10x10x10xf32> to vector<1x10x10xf32>
    %24 = vector.shape_cast %23 : vector<1x10x10xf32> to vector<10x10xf32>
    %25 = arith.addf %22, %24 : vector<10x10xf32>
    %26 = vector.extract_strided_slice %0 {offsets = [2, 0, 0], sizes = [1, 10, 10], strides = [1, 1, 1]} : vector<10x10x10xf32> to vector<1x10x10xf32>
    %27 = vector.shape_cast %26 : vector<1x10x10xf32> to vector<10x10xf32>
    %28 = vector.extract_strided_slice %0 {offsets = [5, 0, 0], sizes = [1, 10, 10], strides = [1, 1, 1]} : vector<10x10x10xf32> to vector<1x10x10xf32>
    %29 = vector.shape_cast %28 : vector<1x10x10xf32> to vector<10x10xf32>
    %30 = arith.addf %27, %29 : vector<10x10xf32>
    %31 = vector.extract_strided_slice %0 {offsets = [3, 0, 0], sizes = [1, 10, 10], strides = [1, 1, 1]} : vector<10x10x10xf32> to vector<1x10x10xf32>
    %32 = vector.shape_cast %31 : vector<1x10x10xf32> to vector<10x10xf32>
    %33 = vector.extract_strided_slice %0 {offsets = [6, 0, 0], sizes = [1, 10, 10], strides = [1, 1, 1]} : vector<10x10x10xf32> to vector<1x10x10xf32>
    %34 = vector.shape_cast %33 : vector<1x10x10xf32> to vector<10x10xf32>
    %35 = arith.addf %32, %34 : vector<10x10xf32>
    %36 = vector.extract_strided_slice %0 {offsets = [3, 0, 0], sizes = [1, 10, 10], strides = [1, 1, 1]} : vector<10x10x10xf32> to vector<1x10x10xf32>
    %37 = vector.shape_cast %36 : vector<1x10x10xf32> to vector<10x10xf32>
    %38 = vector.extract_strided_slice %0 {offsets = [7, 0, 0], sizes = [1, 10, 10], strides = [1, 1, 1]} : vector<10x10x10xf32> to vector<1x10x10xf32>
    %39 = vector.shape_cast %38 : vector<1x10x10xf32> to vector<10x10xf32>
    %40 = arith.addf %37, %39 : vector<10x10xf32>
    %41 = vector.extract_strided_slice %0 {offsets = [4, 0, 0], sizes = [1, 10, 10], strides = [1, 1, 1]} : vector<10x10x10xf32> to vector<1x10x10xf32>
    %42 = vector.shape_cast %41 : vector<1x10x10xf32> to vector<10x10xf32>
    %43 = vector.extract_strided_slice %0 {offsets = [8, 0, 0], sizes = [1, 10, 10], strides = [1, 1, 1]} : vector<10x10x10xf32> to vector<1x10x10xf32>
    %44 = vector.shape_cast %43 : vector<1x10x10xf32> to vector<10x10xf32>
    %45 = arith.addf %42, %44 : vector<10x10xf32>
    %46 = vector.extract_strided_slice %0 {offsets = [4, 0, 0], sizes = [1, 10, 10], strides = [1, 1, 1]} : vector<10x10x10xf32> to vector<1x10x10xf32>
    %47 = vector.shape_cast %46 : vector<1x10x10xf32> to vector<10x10xf32>
    %48 = vector.extract_strided_slice %0 {offsets = [9, 0, 0], sizes = [1, 10, 10], strides = [1, 1, 1]} : vector<10x10x10xf32> to vector<1x10x10xf32>
    %49 = vector.shape_cast %48 : vector<1x10x10xf32> to vector<10x10xf32>
    %50 = arith.addf %47, %49 : vector<10x10xf32>
    %cst = arith.constant dense<0.000000e+00> : vector<10x10xf32>
    %51 = tpu.matmul %10, %5, %cst {dimension_numbers = #tpu.dot_dimension_numbers<[1], [0], [0], [1], [0, 0, 1, 1], [], []>} : vector<10x10xf32>, vector<10x10xf32>, vector<10x10xf32> -> vector<10x10xf32>
    %cst_2 = arith.constant dense<0.000000e+00> : vector<10x10xf32>
    %52 = tpu.matmul %20, %15, %cst_2 {dimension_numbers = #tpu.dot_dimension_numbers<[1], [0], [0], [1], [0, 0, 1, 1], [], []>} : vector<10x10xf32>, vector<10x10xf32>, vector<10x10xf32> -> vector<10x10xf32>
    %cst_3 = arith.constant dense<0.000000e+00> : vector<10x10xf32>
    %53 = tpu.matmul %30, %25, %cst_3 {dimension_numbers = #tpu.dot_dimension_numbers<[1], [0], [0], [1], [0, 0, 1, 1], [], []>} : vector<10x10xf32>, vector<10x10xf32>, vector<10x10xf32> -> vector<10x10xf32>
    %cst_4 = arith.constant dense<0.000000e+00> : vector<10x10xf32>
    %54 = tpu.matmul %40, %35, %cst_4 {dimension_numbers = #tpu.dot_dimension_numbers<[1], [0], [0], [1], [0, 0, 1, 1], [], []>} : vector<10x10xf32>, vector<10x10xf32>, vector<10x10xf32> -> vector<10x10xf32>
    %cst_5 = arith.constant dense<0.000000e+00> : vector<10x10xf32>
    %55 = tpu.matmul %50, %45, %cst_5 {dimension_numbers = #tpu.dot_dimension_numbers<[1], [0], [0], [1], [0, 0, 1, 1], [], []>} : vector<10x10xf32>, vector<10x10xf32>, vector<10x10xf32> -> vector<10x10xf32>
    %cst_6 = arith.constant dense<0.000000e+00> : vector<10x10xf32>
    %56 = tpu.matmul %52, %51, %cst_6 {dimension_numbers = #tpu.dot_dimension_numbers<[1], [0], [0], [1], [0, 0, 1, 1], [], []>} : vector<10x10xf32>, vector<10x10xf32>, vector<10x10xf32> -> vector<10x10xf32>
    %cst_7 = arith.constant dense<0.000000e+00> : vector<10x10xf32>
    %57 = tpu.matmul %54, %53, %cst_7 {dimension_numbers = #tpu.dot_dimension_numbers<[1], [0], [0], [1], [0, 0, 1, 1], [], []>} : vector<10x10xf32>, vector<10x10xf32>, vector<10x10xf32> -> vector<10x10xf32>
    %cst_8 = arith.constant dense<0.000000e+00> : vector<10x10xf32>
    %58 = tpu.matmul %57, %56, %cst_8 {dimension_numbers = #tpu.dot_dimension_numbers<[1], [0], [0], [1], [0, 0, 1, 1], [], []>} : vector<10x10xf32>, vector<10x10xf32>, vector<10x10xf32> -> vector<10x10xf32>
    %cst_9 = arith.constant dense<0.000000e+00> : vector<10x10xf32>
    %59 = tpu.matmul %55, %58, %cst_9 {dimension_numbers = #tpu.dot_dimension_numbers<[1], [0], [0], [1], [0, 0, 1, 1], [], []>} : vector<10x10xf32>, vector<10x10xf32>, vector<10x10xf32> -> vector<10x10xf32>
    %c0_10 = arith.constant 0 : index
    %c0_11 = arith.constant 0 : index
    %60 = vector.load %arg2[%c0_10, %c0_11] : memref<10x16xf32, #tpu.memory_space<vmem>>, vector<10x16xf32>
    %cst_12 = arith.constant dense<0.000000e+00> : vector<10x16xf32>
    %61 = tpu.matmul %59, %60, %cst_12 {dimension_numbers = #tpu.dot_dimension_numbers<[1], [0], [0], [1], [0, 0, 1, 1], [], []>} : vector<10x10xf32>, vector<10x16xf32>, vector<10x16xf32> -> vector<10x16xf32>
    %c0_13 = arith.constant 0 : index
    %c0_14 = arith.constant 0 : index
    %62 = vector.load %arg3[%c0_13, %c0_14] : memref<10x16xf32, #tpu.memory_space<vmem>>, vector<10x16xf32>
    tpu.vector_store %arg3[%c0_13, %c0_14], %61 {strides = array<i32>} : memref<10x16xf32, #tpu.memory_space<vmem>>, vector<10x16xf32>,
    return
  }
  func.func @transform_0(%arg0: i32) -> (i32, i32, i32) {
    %c0_i32 = arith.constant 0 : i32
    %c0_i32_0 = arith.constant 0 : i32
    %c0_i32_1 = arith.constant 0 : i32
    %c0_i32_2 = arith.constant 0 : i32
    return %c0_i32, %c0_i32_0, %c0_i32_1 : i32, i32, i32
  }
  func.func @transform_1(%arg0: i32) -> (i32, i32) {
    %c0_i32 = arith.constant 0 : i32
    %c0_i32_0 = arith.constant 0 : i32
    %c0_i32_1 = arith.constant 0 : i32
    return %c0_i32, %c0_i32_0 : i32, i32
  }
  func.func @transform_2(%arg0: i32) -> (i32, i32) {
    %c0_i32 = arith.constant 0 : i32
    %c0_i32_0 = arith.constant 0 : i32
    %c0_i32_1 = arith.constant 0 : i32
    return %c0_i32, %c0_i32_0 : i32, i32
  }
}

</mosaic_0001>

<llo_original>
// kernel: tpu_custom_call.1
$region0: #{tpu_custom_call.1}
  #allocation0 [shape = 'u32[]', space=smem, size = 0x4, offset = 0x4, fixed_abs, tag = 'smem constant byte address 0x4 - core index']
  #allocation1 [shape = 'u32[72,128]{1,0:T(1,128)}', space=vmem, size = 0x9000, scoped, tag = 'internal scratch']
  %s0 = inlined_call_operand.hbm [shape: f32[10,10,10], index: 0, kind: input, shape index: {}]
  %s1 = inlined_call_operand.hbm [shape: f32[10,16], index: 1, kind: input, shape index: {}]
  %s2 = inlined_call_operand.hbm [shape: f32[10,16], index: 2, kind: output, shape index: {}]
  %s3 = sld [smem:[#allocation0]]
  $region26: #{tpu_custom_call.1} parent=0
    _
  %s5 = ssub.s32 1, %s3
  %s6 = scalar_select 0, %s5, %s3
  $region1: #{tpu_custom_call.1} parent=0
    #allocation2 [shape = 'u8[81920]{0}', space=vmem, size = 0x14000, scoped, tag = 'input window, operand 0, single buffered']
    #allocation3 [shape = 's32[1]{0}', space=sflag, size = 0x4, scoped, tag = 'scoped memory for tpu_custom_call.1']
    #allocation4 [shape = 's32[1]{0}', space=sflag, size = 0x4, scoped, tag = 'scoped memory for tpu_custom_call.1']
    #allocation5 [shape = 'u8[8192]{0}', space=vmem, size = 0x2000, scoped, tag = 'input window, operand 1, single buffered']
    #allocation6 [shape = 's32[1]{0}', space=sflag, size = 0x4, scoped, tag = 'scoped memory for tpu_custom_call.1']
    #allocation7 [shape = 'u8[8192]{0}', space=vmem, size = 0x2000, scoped, tag = 'output window, operand 0, single buffered']
    %7 = vsyncpa [#allocation3], 0
    %8 = vsyncpa [#allocation6], 0
    %9 = vsyncpa [#allocation4], 0
    // Predicated region
    $region2: #{tpu_custom_call.1} parent=1 // pred_check
      _
    $region3: #{tpu_custom_call.1} parent=1 // pred_check_branch
      %11 = sbr.rel (0) target = $region5
    $region4: #{tpu_custom_call.1} parent=1 // pred_region
      %13 = vsyncadd [#allocation3], 0
      %s14 = sshll.u32 %s0, 4
      %s15 = int_to_ptr.hbm [resolvable:$true] %s14
      %s16 = sshll.u32 [#allocation2], 4
      %s17 = int_to_ptr.vmem [resolvable:$true] %s16
      %22 = dma.hbm_to_vmem [thread:$0]  %s15, 2560, %s17, [#allocation3], 128, 128, 8
    $region5: #{tpu_custom_call.1} parent=1 // pred_fallthru
      _
    // Predicated region
    $region6: #{tpu_custom_call.1} parent=1 // pred_check
      _
    $region7: #{tpu_custom_call.1} parent=1 // pred_check_branch
      %24 = sbr.rel (0) target = $region9
    $region8: #{tpu_custom_call.1} parent=1 // pred_region
      %26 = vsyncadd [#allocation6], 0
      %s27 = sshll.u32 %s1, 4
      %s28 = int_to_ptr.hbm [resolvable:$true] %s27
      %s29 = sshll.u32 [#allocation5], 4
      %s30 = int_to_ptr.vmem [resolvable:$true] %s29
      %35 = dma.hbm_to_vmem [thread:$0]  %s28, 256, %s30, [#allocation6], 128, 128, 8
    $region9: #{tpu_custom_call.1} parent=1 // pred_fallthru
      _
    // Predicated region
    $region10: #{tpu_custom_call.1} parent=1 // pred_check
      _
    $region11: #{tpu_custom_call.1} parent=1 // pred_check_branch
      %37 = sbr.rel (0) target = $region13
    $region12: #{tpu_custom_call.1} parent=1 // pred_region
      %39 = dma.done [#allocation3], 2560
    $region13: #{tpu_custom_call.1} parent=1 // pred_fallthru
      _
    // Predicated region
    $region14: #{tpu_custom_call.1} parent=1 // pred_check
      _
    $region15: #{tpu_custom_call.1} parent=1 // pred_check_branch
      %41 = sbr.rel (0) target = $region17
    $region16: #{tpu_custom_call.1} parent=1 // pred_region
      %43 = dma.done [#allocation6], 256
    $region17: #{tpu_custom_call.1} parent=1 // pred_fallthru
      _
    %v44 = vld [vmem:[#allocation2] sm:$0xff]
    %v45 = vld [vmem:[#allocation2 + $0x8] sm:$0x3]
    %v46 = vld [vmem:[#allocation2 + $0x10] sm:$0xff]
    %v47 = vld [vmem:[#allocation2 + $0x18] sm:$0x3]
    %v48 = vld [vmem:[#allocation2 + $0x20] sm:$0xff]
    %v49 = vld [vmem:[#allocation2 + $0x28] sm:$0x3]
    %v50 = vld [vmem:[#allocation2 + $0x30] sm:$0xff]
    %v51 = vld [vmem:[#allocation2 + $0x38] sm:$0x3]
    %v52 = vld [vmem:[#allocation2 + $0x40] sm:$0xff]
    %v53 = vld [vmem:[#allocation2 + $0x48] sm:$0x3]
    %v54 = vld [vmem:[#allocation2 + $0x50] sm:$0xff]
    %v55 = vld [vmem:[#allocation2 + $0x58] sm:$0x3]
    %v56 = vld [vmem:[#allocation2 + $0x60] sm:$0xff]
    %v57 = vld [vmem:[#allocation2 + $0x68] sm:$0x3]
    %v58 = vld [vmem:[#allocation2 + $0x70] sm:$0xff]
    %v59 = vld [vmem:[#allocation2 + $0x78] sm:$0x3]
    %v60 = vld [vmem:[#allocation2 + $0x80] sm:$0xff]
    %v61 = vld [vmem:[#allocation2 + $0x88] sm:$0x3]
    %v62 = vld [vmem:[#allocation2 + $0x90] sm:$0xff]
    %v63 = vld [vmem:[#allocation2 + $0x98] sm:$0x3]
    %v64 = vadd.f32 %v44, %v44
    %v65 = vadd.f32 %v45, %v45
    %v66 = vadd.f32 %v44, %v46
    %v67 = vadd.f32 %v45, %v47
    %v68 = vadd.f32 %v46, %v48
    %v69 = vadd.f32 %v47, %v49
    %v70 = vadd.f32 %v46, %v50
    %v71 = vadd.f32 %v47, %v51
    %v72 = vadd.f32 %v48, %v52
    %v73 = vadd.f32 %v49, %v53
    %v74 = vadd.f32 %v48, %v54
    %v75 = vadd.f32 %v49, %v55
    %v76 = vadd.f32 %v50, %v56
    %v77 = vadd.f32 %v51, %v57
    %v78 = vadd.f32 %v50, %v58
    %v79 = vadd.f32 %v51, %v59
    %v80 = vadd.f32 %v52, %v60
    %v81 = vadd.f32 %v53, %v61
    %v82 = vadd.f32 %v52, %v62
    %v83 = vadd.f32 %v53, %v63
    %vm84 = vcmask 80896
    %v86 = vsel %vm84, %v66, 0
    %v89 = vsel %vm84, %v67, 0
    %vm91 = vcmask 1041408
    %v93 = vsel %vm91, %v65, 0
    %95 = vmatpush.msra.mxu0 0.0
    %96 = vmatpush.msra.mxu0 0.0
    %97 = vmatpush.msra.mxu0 0.0
    %98 = vmatpush.msra.mxu0 0.0
    %99 = vmatpush.msra.mxu0 0.0
    %100 = vmatpush.msra.mxu0 0.0
    %101 = vmatpush.msra.mxu0 0.0
    %102 = vmatpush.msra.mxu0 0.0
    %103 = vmatpush.msra.mxu0 0.0
    %104 = vmatpush.msra.mxu0 0.0
    %105 = vmatpush.msra.mxu0 0.0
    %106 = vmatpush.msra.mxu0 0.0
    %107 = vmatpush.msra.mxu0 0.0
    %108 = vmatpush.msra.mxu0 0.0
    %109 = vmatpush.msra.mxu0 %v93
    %110 = vmatpush.msra.mxu0 %v64
    %111 = vmatmul.f32.gmra.mxu0 %v86
    %v112 = vpop.f32.mrf.mxu0
    %v113 = vadd.f32 0.0, %v112
    %114 = vmatmul.f32.gmra.mxu0 %v89
    %v115 = vpop.f32.mrf.mxu0
    %v116 = vadd.f32 0.0, %v115
    %117 = vdwg.mxu0
    %v119 = vsel %vm84, %v70, 0
    %v122 = vsel %vm84, %v71, 0
    %v125 = vsel %vm91, %v69, 0
    %127 = vmatpush.msra.mxu0 0.0
    %128 = vmatpush.msra.mxu0 0.0
    %129 = vmatpush.msra.mxu0 0.0
    %130 = vmatpush.msra.mxu0 0.0
    %131 = vmatpush.msra.mxu0 0.0
    %132 = vmatpush.msra.mxu0 0.0
    %133 = vmatpush.msra.mxu0 0.0
    %134 = vmatpush.msra.mxu0 0.0
    %135 = vmatpush.msra.mxu0 0.0
    %136 = vmatpush.msra.mxu0 0.0
    %137 = vmatpush.msra.mxu0 0.0
    %138 = vmatpush.msra.mxu0 0.0
    %139 = vmatpush.msra.mxu0 0.0
    %140 = vmatpush.msra.mxu0 0.0
    %141 = vmatpush.msra.mxu0 %v125
    %142 = vmatpush.msra.mxu0 %v68
    %143 = vmatmul.f32.gmra.mxu0 %v119
    %v144 = vpop.f32.mrf.mxu0
    %v145 = vadd.f32 0.0, %v144
    %146 = vmatmul.f32.gmra.mxu0 %v122
    %v147 = vpop.f32.mrf.mxu0
    %v148 = vadd.f32 0.0, %v147
    %149 = vdwg.mxu0
    %v151 = vsel %vm84, %v74, 0
    %v154 = vsel %vm84, %v75, 0
    %v157 = vsel %vm91, %v73, 0
    %159 = vmatpush.msra.mxu0 0.0
    %160 = vmatpush.msra.mxu0 0.0
    %161 = vmatpush.msra.mxu0 0.0
    %162 = vmatpush.msra.mxu0 0.0
    %163 = vmatpush.msra.mxu0 0.0
    %164 = vmatpush.msra.mxu0 0.0
    %165 = vmatpush.msra.mxu0 0.0
    %166 = vmatpush.msra.mxu0 0.0
    %167 = vmatpush.msra.mxu0 0.0
    %168 = vmatpush.msra.mxu0 0.0
    %169 = vmatpush.msra.mxu0 0.0
    %170 = vmatpush.msra.mxu0 0.0
    %171 = vmatpush.msra.mxu0 0.0
    %172 = vmatpush.msra.mxu0 0.0
    %173 = vmatpush.msra.mxu0 %v157
    %174 = vmatpush.msra.mxu0 %v72
    %175 = vmatmul.f32.gmra.mxu0 %v151
    %v176 = vpop.f32.mrf.mxu0
    %v177 = vadd.f32 0.0, %v176
    %178 = vmatmul.f32.gmra.mxu0 %v154
    %v179 = vpop.f32.mrf.mxu0
    %v180 = vadd.f32 0.0, %v179
    %181 = vdwg.mxu0
    %v183 = vsel %vm84, %v78, 0
    %v186 = vsel %vm84, %v79, 0
    %v189 = vsel %vm91, %v77, 0
    %191 = vmatpush.msra.mxu0 0.0
    %192 = vmatpush.msra.mxu0 0.0
    %193 = vmatpush.msra.mxu0 0.0
    %194 = vmatpush.msra.mxu0 0.0
    %195 = vmatpush.msra.mxu0 0.0
    %196 = vmatpush.msra.mxu0 0.0
    %197 = vmatpush.msra.mxu0 0.0
    %198 = vmatpush.msra.mxu0 0.0
    %199 = vmatpush.msra.mxu0 0.0
    %200 = vmatpush.msra.mxu0 0.0
    %201 = vmatpush.msra.mxu0 0.0
    %202 = vmatpush.msra.mxu0 0.0
    %203 = vmatpush.msra.mxu0 0.0
    %204 = vmatpush.msra.mxu0 0.0
    %205 = vmatpush.msra.mxu0 %v189
    %206 = vmatpush.msra.mxu0 %v76
    %207 = vmatmul.f32.gmra.mxu0 %v183
    %v208 = vpop.f32.mrf.mxu0
    %v209 = vadd.f32 0.0, %v208
    %210 = vmatmul.f32.gmra.mxu0 %v186
    %v211 = vpop.f32.mrf.mxu0
    %v212 = vadd.f32 0.0, %v211
    %213 = vdwg.mxu0
    %v215 = vsel %vm84, %v82, 0
    %v218 = vsel %vm84, %v83, 0
    %v221 = vsel %vm91, %v81, 0
    %223 = vmatpush.msra.mxu0 0.0
    %224 = vmatpush.msra.mxu0 0.0
    %225 = vmatpush.msra.mxu0 0.0
    %226 = vmatpush.msra.mxu0 0.0
    %227 = vmatpush.msra.mxu0 0.0
    %228 = vmatpush.msra.mxu0 0.0
    %229 = vmatpush.msra.mxu0 0.0
    %230 = vmatpush.msra.mxu0 0.0
    %231 = vmatpush.msra.mxu0 0.0
    %232 = vmatpush.msra.mxu0 0.0
    %233 = vmatpush.msra.mxu0 0.0
    %234 = vmatpush.msra.mxu0 0.0
    %235 = vmatpush.msra.mxu0 0.0
    %236 = vmatpush.msra.mxu0 0.0
    %237 = vmatpush.msra.mxu0 %v221
    %238 = vmatpush.msra.mxu0 %v80
    %239 = vmatmul.f32.gmra.mxu0 %v215
    %v240 = vpop.f32.mrf.mxu0
    %v241 = vadd.f32 0.0, %v240
    %242 = vmatmul.f32.gmra.mxu0 %v218
    %v243 = vpop.f32.mrf.mxu0
    %v244 = vadd.f32 0.0, %v243
    %245 = vdwg.mxu0
    %v247 = vsel %vm84, %v145, 0
    %v250 = vsel %vm84, %v148, 0
    %v253 = vsel %vm91, %v116, 0
    %255 = vmatpush.msra.mxu0 0.0
    %256 = vmatpush.msra.mxu0 0.0
    %257 = vmatpush.msra.mxu0 0.0
    %258 = vmatpush.msra.mxu0 0.0
    %259 = vmatpush.msra.mxu0 0.0
    %260 = vmatpush.msra.mxu0 0.0
    %261 = vmatpush.msra.mxu0 0.0
    %262 = vmatpush.msra.mxu0 0.0
    %263 = vmatpush.msra.mxu0 0.0
    %264 = vmatpush.msra.mxu0 0.0
    %265 = vmatpush.msra.mxu0 0.0
    %266 = vmatpush.msra.mxu0 0.0
    %267 = vmatpush.msra.mxu0 0.0
    %268 = vmatpush.msra.mxu0 0.0
    %269 = vmatpush.msra.mxu0 %v253
    %270 = vmatpush.msra.mxu0 %v113
    %271 = vmatmul.f32.gmra.mxu0 %v247
    %v272 = vpop.f32.mrf.mxu0
    %v273 = vadd.f32 0.0, %v272
    %274 = vmatmul.f32.gmra.mxu0 %v250
    %v275 = vpop.f32.mrf.mxu0
    %v276 = vadd.f32 0.0, %v275
    %277 = vdwg.mxu0
    %v279 = vsel %vm84, %v209, 0
    %v282 = vsel %vm84, %v212, 0
    %v285 = vsel %vm91, %v180, 0
    %287 = vmatpush.msra.mxu0 0.0
    %288 = vmatpush.msra.mxu0 0.0
    %289 = vmatpush.msra.mxu0 0.0
    %290 = vmatpush.msra.mxu0 0.0
    %291 = vmatpush.msra.mxu0 0.0
    %292 = vmatpush.msra.mxu0 0.0
    %293 = vmatpush.msra.mxu0 0.0
    %294 = vmatpush.msra.mxu0 0.0
    %295 = vmatpush.msra.mxu0 0.0
    %296 = vmatpush.msra.mxu0 0.0
    %297 = vmatpush.msra.mxu0 0.0
    %298 = vmatpush.msra.mxu0 0.0
    %299 = vmatpush.msra.mxu0 0.0
    %300 = vmatpush.msra.mxu0 0.0
    %301 = vmatpush.msra.mxu0 %v285
    %302 = vmatpush.msra.mxu0 %v177
    %303 = vmatmul.f32.gmra.mxu0 %v279
    %v304 = vpop.f32.mrf.mxu0
    %v305 = vadd.f32 0.0, %v304
    %306 = vmatmul.f32.gmra.mxu0 %v282
    %v307 = vpop.f32.mrf.mxu0
    %v308 = vadd.f32 0.0, %v307
    %309 = vdwg.mxu0
    %v311 = vsel %vm84, %v305, 0
    %v314 = vsel %vm84, %v308, 0
    %v317 = vsel %vm91, %v276, 0
    %319 = vmatpush.msra.mxu0 0.0
    %320 = vmatpush.msra.mxu0 0.0
    %321 = vmatpush.msra.mxu0 0.0
    %322 = vmatpush.msra.mxu0 0.0
    %323 = vmatpush.msra.mxu0 0.0
    %324 = vmatpush.msra.mxu0 0.0
    %325 = vmatpush.msra.mxu0 0.0
    %326 = vmatpush.msra.mxu0 0.0
    %327 = vmatpush.msra.mxu0 0.0
    %328 = vmatpush.msra.mxu0 0.0
    %329 = vmatpush.msra.mxu0 0.0
    %330 = vmatpush.msra.mxu0 0.0
    %331 = vmatpush.msra.mxu0 0.0
    %332 = vmatpush.msra.mxu0 0.0
    %333 = vmatpush.msra.mxu0 %v317
    %334 = vmatpush.msra.mxu0 %v273
    %335 = vmatmul.f32.gmra.mxu0 %v311
    %v336 = vpop.f32.mrf.mxu0
    %v337 = vadd.f32 0.0, %v336
    %338 = vmatmul.f32.gmra.mxu0 %v314
    %v339 = vpop.f32.mrf.mxu0
    %v340 = vadd.f32 0.0, %v339
    %341 = vdwg.mxu0
    %v343 = vsel %vm84, %v241, 0
    %v346 = vsel %vm84, %v244, 0
    %v349 = vsel %vm91, %v340, 0
    %351 = vmatpush.msra.mxu0 0.0
    %352 = vmatpush.msra.mxu0 0.0
    %353 = vmatpush.msra.mxu0 0.0
    %354 = vmatpush.msra.mxu0 0.0
    %355 = vmatpush.msra.mxu0 0.0
    %356 = vmatpush.msra.mxu0 0.0
    %357 = vmatpush.msra.mxu0 0.0
    %358 = vmatpush.msra.mxu0 0.0
    %359 = vmatpush.msra.mxu0 0.0
    %360 = vmatpush.msra.mxu0 0.0
    %361 = vmatpush.msra.mxu0 0.0
    %362 = vmatpush.msra.mxu0 0.0
    %363 = vmatpush.msra.mxu0 0.0
    %364 = vmatpush.msra.mxu0 0.0
    %365 = vmatpush.msra.mxu0 %v349
    %366 = vmatpush.msra.mxu0 %v337
    %367 = vmatmul.f32.gmra.mxu0 %v343
    %v368 = vpop.f32.mrf.mxu0
    %v369 = vadd.f32 0.0, %v368
    %370 = vmatmul.f32.gmra.mxu0 %v346
    %v371 = vpop.f32.mrf.mxu0
    %v372 = vadd.f32 0.0, %v371
    %373 = vdwg.mxu0
    %v374 = vld [vmem:[#allocation5] sm:$0xff]
    %v375 = vld [vmem:[#allocation5 + $0x8] sm:$0x3]
    %v377 = vsel %vm84, %v369, 0
    %v380 = vsel %vm84, %v372, 0
    %v383 = vsel %vm91, %v375, 0
    %385 = vmatpush.msra.mxu0 0.0
    %386 = vmatpush.msra.mxu0 0.0
    %387 = vmatpush.msra.mxu0 0.0
    %388 = vmatpush.msra.mxu0 0.0
    %389 = vmatpush.msra.mxu0 0.0
    %390 = vmatpush.msra.mxu0 0.0
    %391 = vmatpush.msra.mxu0 0.0
    %392 = vmatpush.msra.mxu0 0.0
    %393 = vmatpush.msra.mxu0 0.0
    %394 = vmatpush.msra.mxu0 0.0
    %395 = vmatpush.msra.mxu0 0.0
    %396 = vmatpush.msra.mxu0 0.0
    %397 = vmatpush.msra.mxu0 0.0
    %398 = vmatpush.msra.mxu0 0.0
    %399 = vmatpush.msra.mxu0 %v383
    %400 = vmatpush.msra.mxu0 %v374
    %401 = vmatmul.f32.gmra.mxu0 %v377
    %v402 = vpop.f32.mrf.mxu0
    %v403 = vadd.f32 0.0, %v402
    %404 = vmatmul.f32.gmra.mxu0 %v380
    %v405 = vpop.f32.mrf.mxu0
    %v406 = vadd.f32 0.0, %v405
    %407 = vdwg.mxu0
    %vm408 = vcmask 130048
    %409 = vst.msk [vmem:[#allocation7] sm:$0xff] %vm408, %v403
    %vm410 = vcmask 123904
    %411 = vst.msk [vmem:[#allocation7 + $0x8] sm:$0x3] %vm410, %v406
    // Predicated region
    $region18: #{tpu_custom_call.1} parent=1 // pred_check
      _
    $region19: #{tpu_custom_call.1} parent=1 // pred_check_branch
      %413 = sbr.rel (0) target = $region21
    $region20: #{tpu_custom_call.1} parent=1 // pred_region
      %415 = vsyncadd [#allocation4], 0
      %s416 = sshll.u32 [#allocation7], 4
      %s417 = int_to_ptr.vmem [resolvable:$true] %s416
      %s418 = sshll.u32 %s2, 4
      %s419 = int_to_ptr.hbm [resolvable:$true] %s418
      %424 = dma.vmem_to_hbm [thread:$0]  %s417, 256, %s419, [#allocation4], 128, 128, 8
    $region21: #{tpu_custom_call.1} parent=1 // pred_fallthru
      _
    // Predicated region
    $region22: #{tpu_custom_call.1} parent=1 // pred_check
      _
    $region23: #{tpu_custom_call.1} parent=1 // pred_check_branch
      %426 = sbr.rel (0) target = $region25
    $region24: #{tpu_custom_call.1} parent=1 // pred_region
      %428 = dma.done [#allocation4], 256
    $region25: #{tpu_custom_call.1} parent=1 // pred_fallthru
      _
    %429 = vsyncpa [#allocation3], 1
    %430 = vsyncpa [#allocation6], 1
    %431 = vsyncpa [#allocation4], 1

</llo_original>
